<compile_context>
chip_gen: v7x
topology: tpu7x:2x2x1
jax: 0.10.0
libtpu: 0.0.40
codegen_flags: <defaults>
</compile_context>

<pallas_src>
import jax
import jax.numpy as jnp
from jax.experimental import pallas as pl
from jax.experimental.pallas import tpu as pltpu


_FAST_PATH_BYTES = 8 * 1024 * 1024          # below this, XLA's fused negate wins
_CANDIDATE_COLS = (2048, 1024, 512, 256, 128)
_SUPPORTED_DTYPES = {
    "float32", "bfloat16", "float16",
    "int8", "uint8", "int16", "uint16", "int32", "uint32",
}

_DEVICE_PARAMS = None  # (block_bytes, vmem_limit_bytes, is_v7x)


def _device_params():
    """Generation-aware tiling parameters, cached after first query."""
    global _DEVICE_PARAMS
    if _DEVICE_PARAMS is None:
        kind = ""
        try:
            kind = (jax.devices()[0].device_kind or "").lower()
        except Exception:
            kind = ""
        is_v7 = "v7" in kind
        # v7x: 8 MiB blocks (2 in + 2 out buffers = 32 MiB of 64 MiB physical VMEM).
        # v5e/v6e: 4 MiB blocks (16 MiB pipeline footprint, 128 MiB physical VMEM).
        block_bytes = (8 if is_v7 else 4) * 1024 * 1024
        vmem_limit = 40 * 1024 * 1024
        _DEVICE_PARAMS = (block_bytes, vmem_limit, is_v7)
    return _DEVICE_PARAMS


def _negate_kernel(x_ref, o_ref):
    # Pure elementwise negation on the VMEM-resident tile (one VPU op per vreg).
    o_ref[...] = -x_ref[...]


def _negate_2d(x2d: jax.Array, *, donate: bool = False) -> jax.Array:
    """Negate a lane-dense 2D slab with a tiled, double-buffered 1-D grid."""
    rows, cols = x2d.shape
    itemsize = jnp.dtype(x2d.dtype).itemsize
    block_bytes, vmem_limit, is_v7 = _device_params()

    # Largest row block that keeps one block <= block_bytes, rounded to a multiple
    # of 32 rows (valid sublane packing for f32 / bf16 / int8 alike).
    max_rows = max(32, ((block_bytes // (cols * itemsize)) // 32) * 32)
    block_rows = rows if rows <= max_rows else max_rows   # full-extent if small
    grid = (pl.cdiv(rows, block_rows),)

    # Only v7x has 2 TensorCores; CORE_PARALLEL shards the row grid across them
    # so both cores' DMA engines drive HBM. Single-TC chips stay ARBITRARY.
    if is_v7 and grid[0] > 1:
        semantics = (pltpu.CORE_PARALLEL,)
    else:
        semantics = (pltpu.ARBITRARY,)

    kwargs = {}
    if donate:
        # Write -x in place over the (dead) input buffer: no second HBM allocation.
        kwargs["input_output_aliases"] = {0: 0}

    return pl.pallas_call(
        _negate_kernel,
        out_shape=jax.ShapeDtypeStruct((rows, cols), x2d.dtype),
        grid_spec=pltpu.PrefetchScalarGridSpec(
            num_scalar_prefetch=0,
            grid=grid,
            in_specs=[pl.BlockSpec((block_rows, cols), lambda i: (i, 0))],
            out_specs=pl.BlockSpec((block_rows, cols), lambda i: (i, 0)),
        ),
        compiler_params=pltpu.CompilerParams(
            dimension_semantics=semantics,
            vmem_limit_bytes=vmem_limit,
        ),
        **kwargs,
    )(x2d)


def negative_c_encoder(x: jax.Array, *, force_pallas: bool = False,
                       donate: bool = False) -> jax.Array:
    """Pallas implementation of NegativeCEncoder.forward: y = -x."""
    if x.size == 0 or x.dtype.name not in _SUPPORTED_DTYPES:
        # Unsupported / sub-byte dtypes (and empties) go straight to XLA.
        return -x

    nbytes = x.size * x.dtype.itemsize
    if not force_pallas and nbytes < _FAST_PATH_BYTES:
        # Custom-call + pipeline prologue cost exceeds the whole negation here;
        # XLA's fused negate is already at the HBM roofline.
        return -x

    orig_shape = x.shape
    n = x.size
    flat = x.reshape(-1)

    # Lane-dense column count (multiple of 128) that divides the element count.
    cols = next((c for c in _CANDIDATE_COLS if n % c == 0), None)
    if cols is not None:
        y2d = _negate_2d(flat.reshape(n // cols, cols), donate=donate)
        return y2d.reshape(orig_shape)

    if not force_pallas:
        # Non-128-divisible element count: any Pallas pad/slice detour only adds
        # HBM passes over the 2 the op needs; XLA's fused negate is optimal.
        return -x

    # Forced Pallas on an awkward size: kernel over the largest 128-multiple
    # prefix, plain XLA negate for the (<128-element) tail.
    head = (n // 128) * 128
    if head == 0:
        return -x
    hcols = next(c for c in _CANDIDATE_COLS if head % c == 0)  # 128 always works
    y_head = _negate_2d(flat[:head].reshape(head // hcols, hcols)).reshape(head)
    y_tail = -flat[head:]
    return jnp.concatenate([y_head, y_tail]).reshape(orig_shape)


if __name__ == "__main__":
    key = jax.random.PRNGKey(0)
    k1, k2, k3, k4 = jax.random.split(key, 4)

    # 1) Spec-sized NCHW input (2, 4, 16, 16), forced through the Pallas kernel.
    x1 = jax.random.normal(k1, (2, 4, 16, 16), dtype=jnp.float32)
    y1 = jax.block_until_ready(negative_c_encoder(x1, force_pallas=True))
    assert y1.shape == x1.shape and y1.dtype == x1.dtype
    assert jnp.allclose(y1, -x1), "forced Pallas path mismatch vs reference -x"

    # 1b) Same input through default dispatch (small -> XLA fast path).
    y1b = jax.block_until_ready(negative_c_encoder(x1))
    assert jnp.allclose(y1b, -x1), "fast-path mismatch vs reference -x"

    # 2) 16 MiB tensor -> multi-step tiled Pallas grid with double-buffered DMA.
    x2 = jax.random.normal(k2, (16, 16, 128, 128), dtype=jnp.float32)
    y2 = jax.block_until_ready(negative_c_encoder(x2))
    assert jnp.allclose(y2, -x2), "tiled Pallas path mismatch vs reference -x"

    # 3) Awkward (non-128-divisible) element count, forced: prefix kernel + XLA tail.
    x3 = jax.random.normal(k3, (3, 5, 7, 11), dtype=jnp.float32)
    y3 = jax.block_until_ready(negative_c_encoder(x3, force_pallas=True))
    assert jnp.allclose(y3, -x3), "prefix+tail Pallas path mismatch vs reference -x"

    # 4) bf16 coverage (different sublane packing), forced through Pallas.
    x4 = jax.random.normal(k4, (8, 4, 16, 128), dtype=jnp.bfloat16)
    y4 = jax.block_until_ready(negative_c_encoder(x4, force_pallas=True))
    assert jnp.array_equal(y4, -x4), "bf16 Pallas path mismatch vs reference -x"

    # 5) Donated temporary negated in place (input_output_aliases={0: 0}).
    tmp = x2 * 1.0
    y5 = jax.block_until_ready(negative_c_encoder(tmp, donate=True))
    assert jnp.allclose(y5, -x2), "donated (in-place) Pallas path mismatch"

    print("KERNEL_OK")
</pallas_src>

<mosaic_0001>
module attributes {stable_mosaic.version = 11 : i64} {
  func.func @_negate_kernel(%arg0: i32, %arg1: memref<1x2048xf32, #tpu.memory_space<vmem>>, %arg2: memref<1x2048xf32, #tpu.memory_space<vmem>>) attributes {dimension_semantics = [#tpu.dimension_semantics<arbitrary>], iteration_bounds = array<i64: 1>, scalar_prefetch = 0 : i64, scratch_operands = 0 : i64, tpu.core_type = #tpu.core_type<tc>, window_params = [{transform_indices = @transform_0, window_bounds = array<i64: 1, 2048>}, {transform_indices = @transform_1, window_bounds = array<i64: 1, 2048>}]} {
    %c0 = arith.constant 0 : index
    %c0_0 = arith.constant 0 : index
    %0 = vector.load %arg1[%c0, %c0_0] : memref<1x2048xf32, #tpu.memory_space<vmem>>, vector<1x2048xf32>
    %cst = arith.constant 0.000000e+00 : f32
    %1 = vector.broadcast %cst : f32 to vector<1x2048xf32>
    %2 = arith.subf %1, %0 : vector<1x2048xf32>
    %c0_1 = arith.constant 0 : index
    %c0_2 = arith.constant 0 : index
    %3 = vector.load %arg2[%c0_1, %c0_2] : memref<1x2048xf32, #tpu.memory_space<vmem>>, vector<1x2048xf32>
    tpu.vector_store %arg2[%c0_1, %c0_2], %2 {strides = array<i32>} : memref<1x2048xf32, #tpu.memory_space<vmem>>, vector<1x2048xf32>,
    return
  }
  func.func @transform_0(%arg0: i32) -> (i32, i32) {
    %c0_i32 = arith.constant 0 : i32
    %c0_i32_0 = arith.constant 0 : i32
    return %arg0, %c0_i32 : i32, i32
  }
  func.func @transform_1(%arg0: i32) -> (i32, i32) {
    %c0_i32 = arith.constant 0 : i32
    %c0_i32_0 = arith.constant 0 : i32
    return %arg0, %c0_i32 : i32, i32
  }
}

</mosaic_0001>

<llo_original>
// kernel: tpu_custom_call.1
$region0: #{tpu_custom_call.1}
  #allocation0 [shape = 'u32[]', space=smem, size = 0x4, offset = 0x4, fixed_abs, tag = 'smem constant byte address 0x4 - core index']
  #allocation1 [shape = 'u32[144,128]{1,0:T(1,128)}', space=vmem, size = 0x12000, scoped, tag = 'internal scratch']
  %s0 = inlined_call_operand.hbm [shape: f32[1,2048], index: 0, kind: input, shape index: {}]
  %s1 = inlined_call_operand.hbm [shape: f32[1,2048], index: 1, kind: output, shape index: {}]
  %s2 = sld [smem:[#allocation0]]
  $region18: #{tpu_custom_call.1} parent=0
    _
  %s4 = ssub.s32 1, %s2
  %s5 = scalar_select 0, %s4, %s2
  $region1: #{tpu_custom_call.1} parent=0
    #allocation2 [shape = 'u8[8192]{0}', space=vmem, size = 0x2000, scoped, tag = 'input window, operand 0, single buffered']
    #allocation3 [shape = 's32[1]{0}', space=sflag, size = 0x4, scoped, tag = 'scoped memory for tpu_custom_call.1']
    #allocation4 [shape = 's32[1]{0}', space=sflag, size = 0x4, scoped, tag = 'scoped memory for tpu_custom_call.1']
    #allocation5 [shape = 'u8[8192]{0}', space=vmem, size = 0x2000, scoped, tag = 'output window, operand 0, single buffered']
    %6 = vsyncpa [#allocation3], 0
    %7 = vsyncpa [#allocation4], 0
    // Predicated region
    $region2: #{tpu_custom_call.1} parent=1 // pred_check
      _
    $region3: #{tpu_custom_call.1} parent=1 // pred_check_branch
      %9 = sbr.rel (0) target = $region5
    $region4: #{tpu_custom_call.1} parent=1 // pred_region
      %s11 = ssub.s32 256, 256
      %12 = vsyncadd [#allocation3], %s11
      %s14 = sshll.u32 [#allocation2], 4
      %s15 = int_to_ptr.vmem [resolvable:$true] %s14
      %17 = dma.hbm_to_vmem [thread:$0]  %s0, 256, %s15, [#allocation3]
    $region5: #{tpu_custom_call.1} parent=1 // pred_fallthru
      _
    // Predicated region
    $region6: #{tpu_custom_call.1} parent=1 // pred_check
      _
    $region7: #{tpu_custom_call.1} parent=1 // pred_check_branch
      %19 = sbr.rel (0) target = $region9
    $region8: #{tpu_custom_call.1} parent=1 // pred_region
      %20 = dma.done [#allocation3], 256
    $region9: #{tpu_custom_call.1} parent=1 // pred_fallthru
      _
    %v21 = vld [vmem:[#allocation2] sm:$0xff]
    %v22 = vld [vmem:[#allocation2 + $0x8] sm:$0xff]
    %v23 = vsub.f32 0.0, %v21
    %v24 = vsub.f32 0.0, %v22
    %25 = vst [vmem:[#allocation5] sm:$0xff] %v23
    %26 = vst [vmem:[#allocation5 + $0x8] sm:$0xff] %v24
    // Predicated region
    $region10: #{tpu_custom_call.1} parent=1 // pred_check
      _
    $region11: #{tpu_custom_call.1} parent=1 // pred_check_branch
      %28 = sbr.rel (0) target = $region13
    $region12: #{tpu_custom_call.1} parent=1 // pred_region
      %s30 = ssub.s32 256, 256
      %31 = vsyncadd [#allocation4], %s30
      %s33 = sshll.u32 [#allocation5], 4
      %s34 = int_to_ptr.vmem [resolvable:$true] %s33
      %36 = dma.vmem_to_hbm [thread:$0]  %s34, 256, %s1, [#allocation4]
    $region13: #{tpu_custom_call.1} parent=1 // pred_fallthru
      _
    // Predicated region
    $region14: #{tpu_custom_call.1} parent=1 // pred_check
      _
    $region15: #{tpu_custom_call.1} parent=1 // pred_check_branch
      %38 = sbr.rel (0) target = $region17
    $region16: #{tpu_custom_call.1} parent=1 // pred_region
      %39 = dma.done [#allocation4], 256
    $region17: #{tpu_custom_call.1} parent=1 // pred_fallthru
      _
    %40 = vsyncpa [#allocation3], 1
    %41 = vsyncpa [#allocation4], 1

</llo_original>
